<compile_context>
chip_gen: v5e
topology: v5e:2x2
jax: 0.10.0
libtpu: 0.0.40
codegen_flags: <defaults>
</compile_context>

<pallas_src>
import math

import jax
import jax.numpy as jnp
from jax.experimental import pallas as pl
from jax.experimental.pallas import tpu as pltpu


def _round_up(x, m):
    return ((x + m - 1) // m) * m


def _en_kernel(x_ref, w_ref, b_ref, o_ref):
    # y = tanh(x @ W + b); accumulate in f32 on the MXU, tanh runs on the EUP.
    y = jnp.dot(x_ref[...], w_ref[...], preferred_element_type=jnp.float32)
    y = y + b_ref[...].astype(jnp.float32)          # (tm, N) + (1, N) broadcast
    o_ref[...] = jnp.tanh(y).astype(o_ref.dtype)


def en_forward(x, w, b, *, compute_dtype=None, tm_max=256):
    """EN.forward: tanh(x @ W + b).

    x: (B, in_dim); w: (in_dim, out_dim) (transposed vs. PyTorch nn.Linear);
    b: (out_dim,) or (1, out_dim).  Returns (B, out_dim) in x.dtype.
    """
    B, d_in = x.shape
    d_out = w.shape[1]
    b = b.reshape(1, d_out)

    # --- pad feature dims to lane multiples (128), batch to the tile ---
    d_in_p = _round_up(d_in, 128)
    d_out_p = _round_up(d_out, 128)
    if B <= tm_max:
        tm = _round_up(B, 8)          # single block => no grid pipeline overhead
    else:
        tm = tm_max                   # 256-row tiles for big batches
    b_p = _round_up(B, tm)

    out_dtype = x.dtype
    cdt = compute_dtype if compute_dtype is not None else x.dtype

    # Zero padding is semantics-preserving: padded x columns multiply padded
    # (zero) W rows; padded output columns / batch rows are sliced off below.
    x_pad = jnp.zeros((b_p, d_in_p), cdt).at[:B, :d_in].set(x.astype(cdt))
    w_pad = jnp.zeros((d_in_p, d_out_p), cdt).at[:d_in, :d_out].set(w.astype(cdt))
    bias_pad = jnp.zeros((1, d_out_p), jnp.float32).at[:, :d_out].set(
        b.astype(jnp.float32))

    out = pl.pallas_call(
        _en_kernel,
        out_shape=jax.ShapeDtypeStruct((b_p, d_out_p), out_dtype),
        grid_spec=pltpu.PrefetchScalarGridSpec(
            num_scalar_prefetch=0,
            grid=(b_p // tm,),
            in_specs=[
                pl.BlockSpec((tm, d_in_p), lambda i: (i, 0)),       # x tile
                pl.BlockSpec((d_in_p, d_out_p), lambda i: (0, 0)),  # resident W
                pl.BlockSpec((1, d_out_p), lambda i: (0, 0)),       # resident b
            ],
            out_specs=pl.BlockSpec((tm, d_out_p), lambda i: (i, 0)),
        ),
        compiler_params=pltpu.CompilerParams(
            dimension_semantics=("parallel",)),
    )(x_pad, w_pad, bias_pad)

    return out[:B, :d_out]


if __name__ == "__main__":
    # Module-consistent small shapes: input_dim=300 (module default),
    # action_dim=4, batch=8.
    ACTION_DIM, INPUT_DIM, BATCH = 4, 300, 8

    key = jax.random.PRNGKey(0)
    kx, kw, kb, kx2 = jax.random.split(key, 4)

    # PyTorch nn.Linear default init bounds: U(-1/sqrt(fan_in), 1/sqrt(fan_in)).
    bound = 1.0 / math.sqrt(INPUT_DIM)
    x = jax.random.normal(kx, (BATCH, INPUT_DIM), jnp.float32)
    w = jax.random.uniform(kw, (INPUT_DIM, ACTION_DIM), jnp.float32, -bound, bound)
    b = jax.random.uniform(kb, (ACTION_DIM,), jnp.float32, -bound, bound)

    ref = jnp.tanh(x @ w + b)

    # f32 path (small batch -> single grid block, padded dims 384/128).
    out = jax.block_until_ready(en_forward(x, w, b))
    assert out.shape == (BATCH, ACTION_DIM)
    assert jnp.allclose(out, ref, atol=1e-4, rtol=1e-4)

    # bf16 compute path (bf16-native MXU on v6e/v7x); f32 accumulation kept,
    # so only the input-cast precision changes -> looser tolerance expected.
    out_bf16 = jax.block_until_ready(
        en_forward(x, w, b, compute_dtype=jnp.bfloat16))
    assert jnp.allclose(out_bf16.astype(jnp.float32), ref, atol=5e-2)

    # Ragged larger batch -> exercises batch padding + the tiled grid path.
    x_big = jax.random.normal(kx2, (300, INPUT_DIM), jnp.float32)
    ref_big = jnp.tanh(x_big @ w + b)
    out_big = jax.block_until_ready(en_forward(x_big, w, b))
    assert out_big.shape == (300, ACTION_DIM)
    assert jnp.allclose(out_big, ref_big, atol=1e-4, rtol=1e-4)

    print("KERNEL_OK")
</pallas_src>

<mosaic_0001>
module attributes {stable_mosaic.version = 11 : i64} {
  func.func @_en_kernel(%arg0: i32, %arg1: memref<8x384xf32, #tpu.memory_space<vmem>>, %arg2: memref<384x128xf32, #tpu.memory_space<vmem>>, %arg3: memref<1x128xf32, #tpu.memory_space<vmem>>, %arg4: memref<8x128xf32, #tpu.memory_space<vmem>>) attributes {dimension_semantics = [#tpu.dimension_semantics<parallel>], iteration_bounds = array<i64: 1>, scalar_prefetch = 0 : i64, scratch_operands = 0 : i64, tpu.core_type = #tpu.core_type<tc>, window_params = [{transform_indices = @transform_0, window_bounds = array<i64: 8, 384>}, {pipeline_mode = #tpu.pipeline_mode<synchronous>, transform_indices = @transform_1, window_bounds = array<i64: 384, 128>}, {pipeline_mode = #tpu.pipeline_mode<synchronous>, transform_indices = @transform_2, window_bounds = array<i64: 1, 128>}, {transform_indices = @transform_3, window_bounds = array<i64: 8, 128>}]} {
    %c0 = arith.constant 0 : index
    %c0_0 = arith.constant 0 : index
    %0 = vector.load %arg1[%c0, %c0_0] : memref<8x384xf32, #tpu.memory_space<vmem>>, vector<8x384xf32>
    %c0_1 = arith.constant 0 : index
    %c0_2 = arith.constant 0 : index
    %1 = vector.load %arg2[%c0_1, %c0_2] : memref<384x128xf32, #tpu.memory_space<vmem>>, vector<384x128xf32>
    %cst = arith.constant dense<0.000000e+00> : vector<8x128xf32>
    %2 = tpu.matmul %0, %1, %cst {dimension_numbers = #tpu.dot_dimension_numbers<[1], [0], [0], [1], [0, 0, 1, 1], [], []>} : vector<8x384xf32>, vector<384x128xf32>, vector<8x128xf32> -> vector<8x128xf32>
    %c0_3 = arith.constant 0 : index
    %c0_4 = arith.constant 0 : index
    %3 = vector.load %arg3[%c0_3, %c0_4] : memref<1x128xf32, #tpu.memory_space<vmem>>, vector<1x128xf32>
    %4 = vector.broadcast %3 : vector<1x128xf32> to vector<8x128xf32>
    %5 = arith.addf %2, %4 : vector<8x128xf32>
    %6 = math.tanh %5 : vector<8x128xf32>
    %c0_5 = arith.constant 0 : index
    %c0_6 = arith.constant 0 : index
    %7 = vector.load %arg4[%c0_5, %c0_6] : memref<8x128xf32, #tpu.memory_space<vmem>>, vector<8x128xf32>
    tpu.vector_store %arg4[%c0_5, %c0_6], %6 {strides = array<i32>} : memref<8x128xf32, #tpu.memory_space<vmem>>, vector<8x128xf32>,
    return
  }
  func.func @transform_0(%arg0: i32) -> (i32, i32) {
    %c0_i32 = arith.constant 0 : i32
    %c0_i32_0 = arith.constant 0 : i32
    return %arg0, %c0_i32 : i32, i32
  }
  func.func @transform_1(%arg0: i32) -> (i32, i32) {
    %c0_i32 = arith.constant 0 : i32
    %c0_i32_0 = arith.constant 0 : i32
    %c0_i32_1 = arith.constant 0 : i32
    return %c0_i32, %c0_i32_0 : i32, i32
  }
  func.func @transform_2(%arg0: i32) -> (i32, i32) {
    %c0_i32 = arith.constant 0 : i32
    %c0_i32_0 = arith.constant 0 : i32
    %c0_i32_1 = arith.constant 0 : i32
    return %c0_i32, %c0_i32_0 : i32, i32
  }
  func.func @transform_3(%arg0: i32) -> (i32, i32) {
    %c0_i32 = arith.constant 0 : i32
    %c0_i32_0 = arith.constant 0 : i32
    return %arg0, %c0_i32 : i32, i32
  }
}

</mosaic_0001>

<llo_original>
// kernel: tpu_custom_call.1
$region0: #{tpu_custom_call.1}
  #allocation0 [shape = 'u32[]', space=smem, size = 0x4, offset = 0x4, fixed_abs, tag = 'smem constant byte address 0x4 - core index']
  #allocation1 [shape = 'u32[72,128]{1,0:T(1,128)}', space=vmem, size = 0x9000, scoped, tag = 'internal scratch']
  %s0 = inlined_call_operand.hbm [shape: f32[8,384], index: 0, kind: input, shape index: {}]
  %s1 = inlined_call_operand.hbm [shape: f32[384,128], index: 1, kind: input, shape index: {}]
  %s2 = inlined_call_operand.vmem [shape: f32[1,128], index: 2, kind: input, shape index: {}]
  %s3 = inlined_call_operand.hbm [shape: f32[8,128], index: 3, kind: output, shape index: {}]
  %s4 = sld [smem:[#allocation0]]
  $region30: #{tpu_custom_call.1} parent=0
    _
  %s6 = ssub.s32 1, %s4
  %s7 = scalar_select 0, %s6, %s4
  $region1: #{tpu_custom_call.1} parent=0
    #allocation2 [shape = 'u8[12288]{0}', space=vmem, size = 0x3000, scoped, tag = 'input window, operand 0, single buffered']
    #allocation3 [shape = 's32[1]{0}', space=sflag, size = 0x4, scoped, tag = 'scoped memory for tpu_custom_call.1']
    #allocation4 [shape = 's32[1]{0}', space=sflag, size = 0x4, scoped, tag = 'scoped memory for tpu_custom_call.1']
    #allocation5 [shape = 'u8[196608]{0}', space=vmem, size = 0x30000, scoped, tag = 'input window, operand 1, single buffered']
    #allocation6 [shape = 's32[1]{0}', space=sflag, size = 0x4, scoped, tag = 'scoped memory for tpu_custom_call.1']
    #allocation7 [shape = 'u8[4096]{0}', space=vmem, size = 0x1000, scoped, tag = 'output window, operand 0, single buffered']
    %8 = vsyncpa [#allocation3], 0
    %9 = vsyncpa [#allocation6], 0
    %10 = vsyncpa [#allocation4], 0
    // Predicated region
    $region2: #{tpu_custom_call.1} parent=1 // pred_check
      _
    $region3: #{tpu_custom_call.1} parent=1 // pred_check_branch
      %12 = sbr.rel (0) target = $region5
    $region4: #{tpu_custom_call.1} parent=1 // pred_region
      %14 = vsyncadd [#allocation3], 0
      %s16 = sshll.u32 %s0, 4
      %s17 = int_to_ptr.hbm [resolvable:$true] %s16
      %s18 = sshll.u32 [#allocation2], 4
      %s19 = int_to_ptr.vmem [resolvable:$true] %s18
      %21 = dma.hbm_to_vmem [thread:$0]  %s17, 384, %s19, [#allocation3]
    $region5: #{tpu_custom_call.1} parent=1 // pred_fallthru
      _
    // Predicated region
    $region6: #{tpu_custom_call.1} parent=1 // pred_check
      _
    $region7: #{tpu_custom_call.1} parent=1 // pred_check_branch
      %23 = sbr.rel (0) target = $region9
    $region8: #{tpu_custom_call.1} parent=1 // pred_region
      %25 = vsyncadd [#allocation6], 0
      %s26 = sshll.u32 %s1, 4
      %s27 = int_to_ptr.hbm [resolvable:$true] %s26
      %s28 = sshll.u32 [#allocation5], 4
      %s29 = int_to_ptr.vmem [resolvable:$true] %s28
      %34 = dma.hbm_to_vmem [thread:$0]  %s27, 6144, %s29, [#allocation6], 128, 128, 8
    $region9: #{tpu_custom_call.1} parent=1 // pred_fallthru
      _
    // Predicated region
    $region10: #{tpu_custom_call.1} parent=1 // pred_check
      _
    $region11: #{tpu_custom_call.1} parent=1 // pred_check_branch
      %36 = sbr.rel (0) target = $region13
    $region12: #{tpu_custom_call.1} parent=1 // pred_region
      _
    $region13: #{tpu_custom_call.1} parent=1 // pred_fallthru
      _
    // Predicated region
    $region14: #{tpu_custom_call.1} parent=1 // pred_check
      _
    $region15: #{tpu_custom_call.1} parent=1 // pred_check_branch
      %38 = sbr.rel (0) target = $region17
    $region16: #{tpu_custom_call.1} parent=1 // pred_region
      %40 = dma.done [#allocation3], 384
    $region17: #{tpu_custom_call.1} parent=1 // pred_fallthru
      _
    // Predicated region
    $region18: #{tpu_custom_call.1} parent=1 // pred_check
      _
    $region19: #{tpu_custom_call.1} parent=1 // pred_check_branch
      %42 = sbr.rel (0) target = $region21
    $region20: #{tpu_custom_call.1} parent=1 // pred_region
      %44 = dma.done [#allocation6], 6144
    $region21: #{tpu_custom_call.1} parent=1 // pred_fallthru
      _
    %v45 = vld [vmem:[#allocation2] sm:$0xff]
    %v46 = vld [vmem:[#allocation2 + $0x8] sm:$0xff]
    %v47 = vld [vmem:[#allocation2 + $0x10] sm:$0xff]
    %v48 = vld [vmem:[#allocation5] sm:$0xff]
    %v49 = vld [vmem:[#allocation5 + $0x8] sm:$0xff]
    %v50 = vld [vmem:[#allocation5 + $0x10] sm:$0xff]
    %v51 = vld [vmem:[#allocation5 + $0x18] sm:$0xff]
    %v52 = vld [vmem:[#allocation5 + $0x20] sm:$0xff]
    %v53 = vld [vmem:[#allocation5 + $0x28] sm:$0xff]
    %v54 = vld [vmem:[#allocation5 + $0x30] sm:$0xff]
    %v55 = vld [vmem:[#allocation5 + $0x38] sm:$0xff]
    %v56 = vld [vmem:[#allocation5 + $0x40] sm:$0xff]
    %v57 = vld [vmem:[#allocation5 + $0x48] sm:$0xff]
    %v58 = vld [vmem:[#allocation5 + $0x50] sm:$0xff]
    %v59 = vld [vmem:[#allocation5 + $0x58] sm:$0xff]
    %v60 = vld [vmem:[#allocation5 + $0x60] sm:$0xff]
    %v61 = vld [vmem:[#allocation5 + $0x68] sm:$0xff]
    %v62 = vld [vmem:[#allocation5 + $0x70] sm:$0xff]
    %v63 = vld [vmem:[#allocation5 + $0x78] sm:$0xff]
    %v64 = vld [vmem:[#allocation5 + $0x80] sm:$0xff]
    %v65 = vld [vmem:[#allocation5 + $0x88] sm:$0xff]
    %v66 = vld [vmem:[#allocation5 + $0x90] sm:$0xff]
    %v67 = vld [vmem:[#allocation5 + $0x98] sm:$0xff]
    %v68 = vld [vmem:[#allocation5 + $0xa0] sm:$0xff]
    %v69 = vld [vmem:[#allocation5 + $0xa8] sm:$0xff]
    %v70 = vld [vmem:[#allocation5 + $0xb0] sm:$0xff]
    %v71 = vld [vmem:[#allocation5 + $0xb8] sm:$0xff]
    %v72 = vld [vmem:[#allocation5 + $0xc0] sm:$0xff]
    %v73 = vld [vmem:[#allocation5 + $0xc8] sm:$0xff]
    %v74 = vld [vmem:[#allocation5 + $0xd0] sm:$0xff]
    %v75 = vld [vmem:[#allocation5 + $0xd8] sm:$0xff]
    %v76 = vld [vmem:[#allocation5 + $0xe0] sm:$0xff]
    %v77 = vld [vmem:[#allocation5 + $0xe8] sm:$0xff]
    %v78 = vld [vmem:[#allocation5 + $0xf0] sm:$0xff]
    %v79 = vld [vmem:[#allocation5 + $0xf8] sm:$0xff]
    %v80 = vld [vmem:[#allocation5 + $0x100] sm:$0xff]
    %v81 = vld [vmem:[#allocation5 + $0x108] sm:$0xff]
    %v82 = vld [vmem:[#allocation5 + $0x110] sm:$0xff]
    %v83 = vld [vmem:[#allocation5 + $0x118] sm:$0xff]
    %v84 = vld [vmem:[#allocation5 + $0x120] sm:$0xff]
    %v85 = vld [vmem:[#allocation5 + $0x128] sm:$0xff]
    %v86 = vld [vmem:[#allocation5 + $0x130] sm:$0xff]
    %v87 = vld [vmem:[#allocation5 + $0x138] sm:$0xff]
    %v88 = vld [vmem:[#allocation5 + $0x140] sm:$0xff]
    %v89 = vld [vmem:[#allocation5 + $0x148] sm:$0xff]
    %v90 = vld [vmem:[#allocation5 + $0x150] sm:$0xff]
    %v91 = vld [vmem:[#allocation5 + $0x158] sm:$0xff]
    %v92 = vld [vmem:[#allocation5 + $0x160] sm:$0xff]
    %v93 = vld [vmem:[#allocation5 + $0x168] sm:$0xff]
    %v94 = vld [vmem:[#allocation5 + $0x170] sm:$0xff]
    %v95 = vld [vmem:[#allocation5 + $0x178] sm:$0xff]
    %v96 = vld [vmem:[%s2] sm:$0x1]
    %v98 = vperm.slane %v96, 0
    %100 = vmatpush.msra.mxu0 %v63
    %101 = vmatpush.msra.mxu0 %v62
    %102 = vmatpush.msra.mxu0 %v61
    %103 = vmatpush.msra.mxu0 %v60
    %104 = vmatpush.msra.mxu0 %v59
    %105 = vmatpush.msra.mxu0 %v58
    %106 = vmatpush.msra.mxu0 %v57
    %107 = vmatpush.msra.mxu0 %v56
    %108 = vmatpush.msra.mxu0 %v55
    %109 = vmatpush.msra.mxu0 %v54
    %110 = vmatpush.msra.mxu0 %v53
    %111 = vmatpush.msra.mxu0 %v52
    %112 = vmatpush.msra.mxu0 %v51
    %113 = vmatpush.msra.mxu0 %v50
    %114 = vmatpush.msra.mxu0 %v49
    %115 = vmatpush.msra.mxu0 %v48
    %116 = vmatmul.f32.gmra.mxu0 %v45
    %v117 = vpop.f32.mrf.mxu0
    %v118 = vadd.f32 %v98, %v117
    %119 = vdwg.mxu0
    %120 = vmatpush.msra.mxu0 %v79
    %121 = vmatpush.msra.mxu0 %v78
    %122 = vmatpush.msra.mxu0 %v77
    %123 = vmatpush.msra.mxu0 %v76
    %124 = vmatpush.msra.mxu0 %v75
    %125 = vmatpush.msra.mxu0 %v74
    %126 = vmatpush.msra.mxu0 %v73
    %127 = vmatpush.msra.mxu0 %v72
    %128 = vmatpush.msra.mxu0 %v71
    %129 = vmatpush.msra.mxu0 %v70
    %130 = vmatpush.msra.mxu0 %v69
    %131 = vmatpush.msra.mxu0 %v68
    %132 = vmatpush.msra.mxu0 %v67
    %133 = vmatpush.msra.mxu0 %v66
    %134 = vmatpush.msra.mxu0 %v65
    %135 = vmatpush.msra.mxu0 %v64
    %136 = vmatmul.f32.gmra.mxu0 %v46
    %v137 = vpop.f32.mrf.mxu0
    %v138 = vadd.f32 %v118, %v137
    %139 = vdwg.mxu0
    %140 = vmatpush.msra.mxu0 %v95
    %141 = vmatpush.msra.mxu0 %v94
    %142 = vmatpush.msra.mxu0 %v93
    %143 = vmatpush.msra.mxu0 %v92
    %144 = vmatpush.msra.mxu0 %v91
    %145 = vmatpush.msra.mxu0 %v90
    %146 = vmatpush.msra.mxu0 %v89
    %147 = vmatpush.msra.mxu0 %v88
    %148 = vmatpush.msra.mxu0 %v87
    %149 = vmatpush.msra.mxu0 %v86
    %150 = vmatpush.msra.mxu0 %v85
    %151 = vmatpush.msra.mxu0 %v84
    %152 = vmatpush.msra.mxu0 %v83
    %153 = vmatpush.msra.mxu0 %v82
    %154 = vmatpush.msra.mxu0 %v81
    %155 = vmatpush.msra.mxu0 %v80
    %156 = vmatmul.f32.gmra.mxu0 %v47
    %v157 = vpop.f32.mrf.mxu0
    %v158 = vadd.f32 %v138, %v157
    %159 = vdwg.mxu0
    %v160 = vtanh.pop %v158
    %161 = vst [vmem:[#allocation7] sm:$0xff] %v160
    // Predicated region
    $region22: #{tpu_custom_call.1} parent=1 // pred_check
      _
    $region23: #{tpu_custom_call.1} parent=1 // pred_check_branch
      %163 = sbr.rel (0) target = $region25
    $region24: #{tpu_custom_call.1} parent=1 // pred_region
      %165 = vsyncadd [#allocation4], 0
      %s167 = sshll.u32 [#allocation7], 4
      %s168 = int_to_ptr.vmem [resolvable:$true] %s167
      %s169 = sshll.u32 %s3, 4
      %s170 = int_to_ptr.hbm [resolvable:$true] %s169
      %172 = dma.vmem_to_hbm [thread:$0]  %s168, 128, %s170, [#allocation4]
    $region25: #{tpu_custom_call.1} parent=1 // pred_fallthru
      _
    // Predicated region
    $region26: #{tpu_custom_call.1} parent=1 // pred_check
      _
    $region27: #{tpu_custom_call.1} parent=1 // pred_check_branch
      %174 = sbr.rel (0) target = $region29
    $region28: #{tpu_custom_call.1} parent=1 // pred_region
      %176 = dma.done [#allocation4], 128
    $region29: #{tpu_custom_call.1} parent=1 // pred_fallthru
      _
    %177 = vsyncpa [#allocation3], 1
    %178 = vsyncpa [#allocation6], 1
    %179 = vsyncpa [#allocation4], 1

</llo_original>
